<compile_context>
chip_gen: v6e
topology: v6e:2x2x1
jax: 0.10.0
libtpu: 0.0.40
codegen_flags: <defaults>
</compile_context>

<pallas_src>
import functools

import jax
import jax.numpy as jnp
from jax.experimental import pallas as pl
from jax.experimental.pallas import tpu as pltpu


def _robust_l1_kernel(gt_ref, pred_ref, mask_ref, loss_ref, cnt_ref, *,
                      epsilon: float, q: float, rows_total: int,
                      tile_rows: int):
    """One (batch, row-tile) grid step.

    gt_ref, pred_ref : (1, C, TR, L) VMEM tiles, native input dtype
    mask_ref         : (1, 1, TR, L) VMEM tile (mask channel 0, native dtype)
    loss_ref, cnt_ref: (1, 1, 8|TR, L) per-(batch, tile) partial-sum blocks
    """
    gt = gt_ref[0]                               # (C, TR, L) native dtype
    pred = pred_ref[0]                           # (C, TR, L) native dtype
    mask = mask_ref[0, 0].astype(jnp.float32)    # (TR, L)

    # abs-diff in native dtype (halves VALU/VMEM traffic for bf16 inputs);
    # channel sum, +epsilon, pow and mask multiply in f32.
    diff = jnp.abs(pred - gt)                                    # (C, TR, L)
    s = jnp.sum(diff.astype(jnp.float32), axis=0) + epsilon      # (TR, L)
    lossvalue = jnp.power(s, q) * mask                           # (TR, L)

    TR, L = lossvalue.shape

    # Ragged last row-tile: padded block contents are unspecified, so select
    # (not multiply) the out-of-range rows to exactly zero.
    if rows_total % tile_rows != 0:
        t = pl.program_id(1)
        row = t * tile_rows + jax.lax.broadcasted_iota(jnp.int32, (TR, L), 0)
        in_bounds = row < rows_total
        lossvalue = jnp.where(in_bounds, lossvalue, 0.0)
        mask = jnp.where(in_bounds, mask, 0.0)

    # TODO(synk): torch.isfinite(lossvalue).all() runtime assert has no clean
    # in-kernel equivalent; omitted.

    # Fold the row-tile down to one (8, L) slab with pure VPU adds
    # (layout-preserving reshape); the final XLU reduce happens in glue.
    if TR % 8 == 0:
        loss_part = jnp.sum(lossvalue.reshape(TR // 8, 8, L), axis=0)
        cnt_part = jnp.sum(mask.reshape(TR // 8, 8, L), axis=0)
    else:  # tiny inputs only (TR == R < 8): emit the raw (TR, L) slab.
        loss_part = lossvalue
        cnt_part = mask

    loss_ref[0, 0] = loss_part
    cnt_ref[0, 0] = cnt_part


def _device_budget():
    """(target bytes per gt/pred tile, vmem_limit_bytes) per TPU generation."""
    try:
        kind = jax.devices()[0].device_kind.lower()
    except Exception:  # pragma: no cover - defensive
        kind = ""
    if "v7" in kind:
        # 64 MiB physical VMEM per TC, 3.2 TB/s HBM: big tiles to amortize the
        # ~0.35 us per-step overhead, but leave headroom below physical.
        return 6 * 1024 * 1024, 56 * 1024 * 1024
    if "v6" in kind:
        # 128 MiB physical: 4 MiB tiles + generous scoped limit are free.
        return 4 * 1024 * 1024, 64 * 1024 * 1024
    # v5e / unknown: ~0.8 TB/s HBM -> 2 MiB tiles already hide the per-step
    # overhead; just lift the 16 MiB default scoped-VMEM limit out of the way.
    return 2 * 1024 * 1024, 32 * 1024 * 1024


def _choose_tiling(H, W, C, itemsize, target_bytes):
    """Return (R, L, TR): view H*W as (R, L) rows x lanes, tile rows by TR."""
    hw = H * W
    if hw % 128 == 0:
        R, L = hw // 128, 128                  # lane-dense layout
    else:
        # TODO(synk): ragged H*W (not a multiple of 128) keeps the (H, W)
        # minor layout -> partial-lane vregs; only tiny pyramid levels hit it.
        R, L = H, W
    if R <= 8:
        return R, L, R
    bytes_per_row = L * C * itemsize           # one row of one gt/pred tile
    target_rows = max(8, target_bytes // bytes_per_row)
    tr = min(int(target_rows), R)
    tr -= tr % 8
    tr = max(tr, 8)
    return R, L, tr


def robust_l1(flow_gt, flow_pred, flow_mask, *, epsilon=0.01, q=0.4):
    """JAX/Pallas equivalent of RobustL1.forward.

    flow_gt, flow_pred, flow_mask: (B, C, H, W) with C in {2, 3}.
    Returns a float32 scalar (0.0 in the no-valid-batch degenerate case, where
    PyTorch returns zeros(1)).
    """
    B, C, H, W = flow_gt.shape
    assert C in (2, 3), flow_gt.shape
    assert flow_pred.shape == flow_gt.shape, (flow_pred.shape, flow_gt.shape)
    assert flow_mask.shape[0] == B and flow_mask.shape[2:] == (H, W)
    assert flow_mask.shape[1] in (2, 3), flow_mask.shape
    Cm = flow_mask.shape[1]

    itemsize = jnp.dtype(flow_gt.dtype).itemsize
    target_bytes, vmem_limit = _device_budget()
    R, L, TR = _choose_tiling(H, W, C, itemsize, target_bytes)
    n_row_tiles = pl.cdiv(R, TR)
    out_rows = 8 if TR % 8 == 0 else TR

    # Free, metadata-only reshapes: (B, C, H, W) -> (B, C, R, L).
    gt = flow_gt.reshape(B, C, R, L)
    pred = flow_pred.reshape(B, C, R, L)
    mask = flow_mask.reshape(B, Cm, R, L)      # channel 0 picked by BlockSpec

    kernel = functools.partial(_robust_l1_kernel, epsilon=float(epsilon),
                               q=float(q), rows_total=R, tile_rows=TR)

    hw = H * W
    cost = pl.CostEstimate(
        flops=10 * B * C * hw,
        transcendentals=2 * B * hw,            # pow -> exp + log per pixel
        bytes_accessed=(2 * C + 1) * B * hw * itemsize,
    )

    loss_tiles, cnt_tiles = pl.pallas_call(
        kernel,
        out_shape=(
            jax.ShapeDtypeStruct((B, n_row_tiles, out_rows, L), jnp.float32),
            jax.ShapeDtypeStruct((B, n_row_tiles, out_rows, L), jnp.float32),
        ),
        grid=(B, n_row_tiles),
        in_specs=[
            pl.BlockSpec((1, C, TR, L), lambda b, t: (b, 0, t, 0)),
            pl.BlockSpec((1, C, TR, L), lambda b, t: (b, 0, t, 0)),
            pl.BlockSpec((1, 1, TR, L), lambda b, t: (b, 0, t, 0)),
        ],
        out_specs=(
            pl.BlockSpec((1, 1, out_rows, L), lambda b, t: (b, t, 0, 0)),
            pl.BlockSpec((1, 1, out_rows, L), lambda b, t: (b, t, 0, 0)),
        ),
        compiler_params=pltpu.CompilerParams(
            dimension_semantics=("parallel", "parallel"),
            vmem_limit_bytes=vmem_limit),
        cost_estimate=cost,
    )(gt, pred, mask)

    # Glue: final reduce of the tiny per-tile partials, per-batch
    # normalization, and average over batches with >0 valid pixels.
    loss_sum = jnp.sum(loss_tiles, axis=(1, 2, 3))   # (B,)
    count = jnp.sum(cnt_tiles, axis=(1, 2, 3))       # (B,)

    valid = count > 0.0
    safe_count = jnp.where(valid, count, 1.0)
    per_batch = jnp.where(valid, loss_sum / safe_count, 0.0)
    n_valid = jnp.sum(valid.astype(jnp.float32))
    return jnp.where(n_valid > 0.0, jnp.sum(per_batch) / n_valid,
                     jnp.float32(0.0))


def _robust_l1_ref(flow_gt, flow_pred, flow_mask, epsilon=0.01, q=0.4):
    """Pure-JAX reference mirroring the PyTorch forward."""
    mask = flow_mask[:, 0, :, :].astype(jnp.float32)
    diff = jnp.abs(flow_pred.astype(jnp.float32) - flow_gt.astype(jnp.float32))
    lv = (jnp.sum(diff, axis=1) + epsilon) ** q * mask
    count = jnp.sum(mask, axis=(1, 2))
    valid = count > 0
    per = jnp.where(valid,
                    jnp.sum(lv, axis=(1, 2)) / jnp.where(valid, count, 1.0),
                    0.0)
    n_valid = jnp.sum(valid.astype(jnp.float32))
    return jnp.where(n_valid > 0, jnp.sum(per) / n_valid, 0.0)


if __name__ == "__main__":
    rl = jax.jit(robust_l1)

    # Case 1: lane-dense layout (H*W % 128 == 0), single row-tile per batch.
    B, C, H, W = 2, 2, 16, 16
    k1, k2, k3 = jax.random.split(jax.random.PRNGKey(0), 3)
    gt = jax.random.normal(k1, (B, C, H, W), dtype=jnp.float32)
    pred = jax.random.normal(k2, (B, C, H, W), dtype=jnp.float32)
    bits = (jax.random.uniform(k3, (B, 1, H, W)) > 0.3).astype(jnp.float32)
    mask = jnp.tile(bits, (1, C, 1, 1))
    out = jax.block_until_ready(rl(gt, pred, mask))
    ref = _robust_l1_ref(gt, pred, mask)
    assert jnp.allclose(out, ref, rtol=1e-5, atol=1e-5), (out, ref)

    # Case 2: C=3, ragged row tiling (R=15, TR=8 -> masked last tile), and one
    # batch with zero valid pixels (exercises the valid-batch filtering).
    B, C, H, W = 2, 3, 24, 80
    k1, k2, k3 = jax.random.split(jax.random.PRNGKey(1), 3)
    gt = jax.random.normal(k1, (B, C, H, W), dtype=jnp.float32)
    pred = jax.random.normal(k2, (B, C, H, W), dtype=jnp.float32)
    bits = (jax.random.uniform(k3, (B, 1, H, W)) > 0.5).astype(jnp.float32)
    bits = bits.at[1].set(0.0)
    mask = jnp.tile(bits, (1, C, 1, 1))
    out = jax.block_until_ready(rl(gt, pred, mask))
    ref = _robust_l1_ref(gt, pred, mask)
    assert jnp.allclose(out, ref, rtol=1e-5, atol=1e-5), (out, ref)

    # Case 3: H*W not a multiple of 128 -> (H, W) fallback layout + ragged tile.
    B, C, H, W = 2, 2, 12, 20
    k1, k2, k3 = jax.random.split(jax.random.PRNGKey(2), 3)
    gt = jax.random.normal(k1, (B, C, H, W), dtype=jnp.float32)
    pred = jax.random.normal(k2, (B, C, H, W), dtype=jnp.float32)
    bits = (jax.random.uniform(k3, (B, 1, H, W)) > 0.4).astype(jnp.float32)
    mask = jnp.tile(bits, (1, C, 1, 1))
    out = jax.block_until_ready(rl(gt, pred, mask))
    ref = _robust_l1_ref(gt, pred, mask)
    assert jnp.allclose(out, ref, rtol=1e-5, atol=1e-5), (out, ref)

    print("KERNEL_OK")
</pallas_src>

<mosaic_0001>
module attributes {stable_mosaic.version = 11 : i64} {
  func.func @_robust_l1_kernel(%arg0: i32, %arg1: i32, %arg2: memref<1x2x2x128xf32, #tpu.memory_space<vmem>>, %arg3: memref<1x2x2x128xf32, #tpu.memory_space<vmem>>, %arg4: memref<1x1x2x128xf32, #tpu.memory_space<vmem>>, %arg5: memref<1x1x2x128xf32, #tpu.memory_space<vmem>>, %arg6: memref<1x1x2x128xf32, #tpu.memory_space<vmem>>) attributes {dimension_semantics = [#tpu.dimension_semantics<parallel>, #tpu.dimension_semantics<parallel>], iteration_bounds = array<i64: 2, 1>, scalar_prefetch = 0 : i64, scratch_operands = 0 : i64, tpu.core_type = #tpu.core_type<tc>, window_params = [{transform_indices = @transform_0, window_bounds = array<i64: 1, 2, 2, 128>}, {transform_indices = @transform_1, window_bounds = array<i64: 1, 2, 2, 128>}, {transform_indices = @transform_2, window_bounds = array<i64: 1, 1, 2, 128>}, {transform_indices = @transform_3, window_bounds = array<i64: 1, 1, 2, 128>}, {transform_indices = @transform_4, window_bounds = array<i64: 1, 1, 2, 128>}]} {
    %c0 = arith.constant 0 : index
    %c0_0 = arith.constant 0 : index
    %c0_1 = arith.constant 0 : index
    %c0_2 = arith.constant 0 : index
    %0 = vector.load %arg2[%c0, %c0_0, %c0_1, %c0_2] : memref<1x2x2x128xf32, #tpu.memory_space<vmem>>, vector<1x2x2x128xf32>
    %1 = vector.shape_cast %0 : vector<1x2x2x128xf32> to vector<2x2x128xf32>
    %c0_3 = arith.constant 0 : index
    %c0_4 = arith.constant 0 : index
    %c0_5 = arith.constant 0 : index
    %c0_6 = arith.constant 0 : index
    %2 = vector.load %arg3[%c0_3, %c0_4, %c0_5, %c0_6] : memref<1x2x2x128xf32, #tpu.memory_space<vmem>>, vector<1x2x2x128xf32>
    %3 = vector.shape_cast %2 : vector<1x2x2x128xf32> to vector<2x2x128xf32>
    %c0_7 = arith.constant 0 : index
    %c0_8 = arith.constant 0 : index
    %c0_9 = arith.constant 0 : index
    %c0_10 = arith.constant 0 : index
    %4 = vector.load %arg4[%c0_7, %c0_8, %c0_9, %c0_10] : memref<1x1x2x128xf32, #tpu.memory_space<vmem>>, vector<1x1x2x128xf32>
    %5 = vector.shape_cast %4 : vector<1x1x2x128xf32> to vector<2x128xf32>
    %6 = arith.subf %3, %1 : vector<2x2x128xf32>
    %7 = math.absf %6 : vector<2x2x128xf32>
    %cst = arith.constant dense<0.000000e+00> : vector<2x128xf32>
    %8 = vector.multi_reduction <add>, %7, %cst [0] : vector<2x2x128xf32> to vector<2x128xf32>
    %cst_11 = arith.constant 0.00999999977 : f32
    %9 = vector.broadcast %cst_11 : f32 to vector<2x128xf32>
    %10 = arith.addf %8, %9 : vector<2x128xf32>
    %cst_12 = arith.constant 4.000000e-01 : f32
    %11 = vector.broadcast %cst_12 : f32 to vector<2x128xf32>
    %12 = math.powf %10, %11 : vector<2x128xf32>
    %13 = arith.mulf %12, %5 : vector<2x128xf32>
    %c0_13 = arith.constant 0 : index
    %c0_14 = arith.constant 0 : index
    %c0_15 = arith.constant 0 : index
    %c0_16 = arith.constant 0 : index
    %14 = vector.load %arg5[%c0_13, %c0_14, %c0_15, %c0_16] : memref<1x1x2x128xf32, #tpu.memory_space<vmem>>, vector<1x1x2x128xf32>
    %15 = vector.shape_cast %14 : vector<1x1x2x128xf32> to vector<2x128xf32>
    %16 = vector.shape_cast %13 : vector<2x128xf32> to vector<1x1x2x128xf32>
    tpu.vector_store %arg5[%c0_13, %c0_14, %c0_15, %c0_16], %16 {strides = array<i32>} : memref<1x1x2x128xf32, #tpu.memory_space<vmem>>, vector<1x1x2x128xf32>,
    %c0_17 = arith.constant 0 : index
    %c0_18 = arith.constant 0 : index
    %c0_19 = arith.constant 0 : index
    %c0_20 = arith.constant 0 : index
    %17 = vector.load %arg6[%c0_17, %c0_18, %c0_19, %c0_20] : memref<1x1x2x128xf32, #tpu.memory_space<vmem>>, vector<1x1x2x128xf32>
    %18 = vector.shape_cast %17 : vector<1x1x2x128xf32> to vector<2x128xf32>
    %19 = vector.shape_cast %5 : vector<2x128xf32> to vector<1x1x2x128xf32>
    tpu.vector_store %arg6[%c0_17, %c0_18, %c0_19, %c0_20], %19 {strides = array<i32>} : memref<1x1x2x128xf32, #tpu.memory_space<vmem>>, vector<1x1x2x128xf32>,
    return
  }
  func.func @transform_0(%arg0: i32, %arg1: i32) -> (i32, i32, i32, i32) {
    %c0_i32 = arith.constant 0 : i32
    %c0_i32_0 = arith.constant 0 : i32
    %c0_i32_1 = arith.constant 0 : i32
    return %arg0, %c0_i32, %arg1, %c0_i32_0 : i32, i32, i32, i32
  }
  func.func @transform_1(%arg0: i32, %arg1: i32) -> (i32, i32, i32, i32) {
    %c0_i32 = arith.constant 0 : i32
    %c0_i32_0 = arith.constant 0 : i32
    %c0_i32_1 = arith.constant 0 : i32
    return %arg0, %c0_i32, %arg1, %c0_i32_0 : i32, i32, i32, i32
  }
  func.func @transform_2(%arg0: i32, %arg1: i32) -> (i32, i32, i32, i32) {
    %c0_i32 = arith.constant 0 : i32
    %c0_i32_0 = arith.constant 0 : i32
    %c0_i32_1 = arith.constant 0 : i32
    return %arg0, %c0_i32, %arg1, %c0_i32_0 : i32, i32, i32, i32
  }
  func.func @transform_3(%arg0: i32, %arg1: i32) -> (i32, i32, i32, i32) {
    %c0_i32 = arith.constant 0 : i32
    %c0_i32_0 = arith.constant 0 : i32
    %c0_i32_1 = arith.constant 0 : i32
    return %arg0, %arg1, %c0_i32, %c0_i32_0 : i32, i32, i32, i32
  }
  func.func @transform_4(%arg0: i32, %arg1: i32) -> (i32, i32, i32, i32) {
    %c0_i32 = arith.constant 0 : i32
    %c0_i32_0 = arith.constant 0 : i32
    %c0_i32_1 = arith.constant 0 : i32
    return %arg0, %arg1, %c0_i32, %c0_i32_0 : i32, i32, i32, i32
  }
}

</mosaic_0001>

<llo_original>
// kernel: robust_l1.1
$region0: #{robust_l1.1}
  #allocation0 [shape = 'u32[]', space=smem, size = 0x4, offset = 0x4, fixed_abs, tag = 'smem constant byte address 0x4 - core index']
  #allocation1 [shape = 'u32[144,128]{1,0:T(1,128)}', space=vmem, size = 0x12000, scoped, tag = 'internal scratch']
  %s0 = inlined_call_operand.vmem [shape: f32[2,2,2,128], index: 0, kind: input, shape index: {}]
  %s1 = inlined_call_operand.vmem [shape: f32[2,2,2,128], index: 1, kind: input, shape index: {}]
  %s2 = inlined_call_operand.vmem [shape: f32[2,2,2,128], index: 2, kind: input, shape index: {}]
  %s3 = inlined_call_operand.vmem [shape: f32[2,1,2,128], index: 3, kind: output, shape index: {0}]
  %s4 = inlined_call_operand.vmem [shape: f32[2,1,2,128], index: 4, kind: output, shape index: {1}]
  %5 = xla_tuple %s3, %s4
  %s6 = sld [smem:[#allocation0]]
  $region53: #{robust_l1.1} parent=0
    _
  %s8 = ssub.s32 1, %s6
  %s9 = scalar_select 0, %s8, %s6
  loop: start=0, step=1, limit=4
  $region2: #{robust_l1.1} parent=0 // loop_pre_header
    _
  $region3: #{robust_l1.1} parent=0 // loop_header
    %s11 = sphi 0, %s15
    %p12 = scmp.ge.s32.totalorder %s11, 4
    %s18 = sphi 0, %s30
    %s19 = sphi 0, %s26
    %s20 = sphi 0, %s18
    %s21 = sphi 0, %s19
    %s22 = sphi 0, %s20
    %s23 = sphi 0, %s21
    %s35 = sphi 0, %s37
    %s38 = sphi 0, %s35
    %s39 = sphi 0, %s38
    %s55 = sphi 0, %s39
    %s63 = sphi 0, %s65
    %s66 = sphi 0, %s63
    %s67 = sphi 0, %s66
    %s83 = sphi 0, %s67
    %s91 = sphi 0, %s93
    %s94 = sphi 0, %s91
    %s95 = sphi 0, %s94
    %s111 = sphi 0, %s95
    %s119 = sphi 0, %s121
    %s122 = sphi 0, %s119
    %s123 = sphi 0, %s122
    %s139 = sphi 0, %s123
    %s147 = sphi 0, %s149
    %s150 = sphi 0, %s147
    %s151 = sphi 0, %s150
    %s167 = sphi 0, %s151
  $region4: #{robust_l1.1} parent=0 // loop_header_branch
    %14 = sbr.rel (%p12) target = $region8
  $region5: #{robust_l1.1} parent=0 // loop_body
    %s16 = ssub.s32 %s11, 1
    %s17 = ssub.s32 %s11, 2
    %s24 = sadd.s32 1, %s19
    %p25 = scmp.ge.s32.totalorder %s24, 1
    %s26 = scalar_select %p25, 0, %s24
    %s27 = sadd.s32 1, %s18
    %s28 = scalar_select %p25, %s27, %s18
    %p29 = scmp.ge.s32.totalorder %s28, 2
    %s30 = scalar_select %p29, 0, %s28
    %s31 = ssub.s32 %s18, %s30
    %s32 = ssub.s32 %s19, %s26
    %s33 = sor.u32 %s31, %s32
    %p34 = scmp.eq.s32.totalorder %s33, 0
    %s36 = sadd.s32 %s35, 1
    %s37 = scalar_select %p34, %s35, %s36
    %p40 = pneg %p34
    %p41 = scmp.eq.s32.totalorder %s11, 1
    %p42 = por %p40, %p41
    %p43 = scmp.ne.s32.totalorder %s35, %s38
    %p44 = scmp.eq.s32.totalorder %s11, 0
    %p45 = por %p43, %p44
    %p46 = scmp.ne.s32.totalorder %s35, %s38
    %p47 = scmp.eq.s32.totalorder %s16, 1
    %p48 = por %p46, %p47
    %p49 = scmp.ne.s32.totalorder %s38, %s39
    %p50 = scmp.eq.s32.totalorder %s16, 0
    %p51 = por %p49, %p50
    %p52 = scmp.ne.s32.totalorder %s38, %s39
    %p53 = scmp.eq.s32.totalorder %s17, 1
    %p54 = por %p52, %p53
    %p56 = scmp.ne.s32.totalorder %s39, %s55
    %p57 = scmp.eq.s32.totalorder %s17, 0
    %p58 = por %p56, %p57
    %s59 = ssub.s32 %s18, %s30
    %s60 = ssub.s32 %s19, %s26
    %s61 = sor.u32 %s59, %s60
    %p62 = scmp.eq.s32.totalorder %s61, 0
    %s64 = sadd.s32 %s63, 1
    %s65 = scalar_select %p62, %s63, %s64
    %p68 = pneg %p62
    %p69 = scmp.eq.s32.totalorder %s11, 1
    %p70 = por %p68, %p69
    %p71 = scmp.ne.s32.totalorder %s63, %s66
    %p72 = scmp.eq.s32.totalorder %s11, 0
    %p73 = por %p71, %p72
    %p74 = scmp.ne.s32.totalorder %s63, %s66
    %p75 = scmp.eq.s32.totalorder %s16, 1
    %p76 = por %p74, %p75
    %p77 = scmp.ne.s32.totalorder %s66, %s67
    %p78 = scmp.eq.s32.totalorder %s16, 0
    %p79 = por %p77, %p78
    %p80 = scmp.ne.s32.totalorder %s66, %s67
    %p81 = scmp.eq.s32.totalorder %s17, 1
    %p82 = por %p80, %p81
    %p84 = scmp.ne.s32.totalorder %s67, %s83
    %p85 = scmp.eq.s32.totalorder %s17, 0
    %p86 = por %p84, %p85
    %s87 = ssub.s32 %s18, %s30
    %s88 = ssub.s32 %s19, %s26
    %s89 = sor.u32 %s87, %s88
    %p90 = scmp.eq.s32.totalorder %s89, 0
    %s92 = sadd.s32 %s91, 1
    %s93 = scalar_select %p90, %s91, %s92
    %p96 = pneg %p90
    %p97 = scmp.eq.s32.totalorder %s11, 1
    %p98 = por %p96, %p97
    %p99 = scmp.ne.s32.totalorder %s91, %s94
    %p100 = scmp.eq.s32.totalorder %s11, 0
    %p101 = por %p99, %p100
    %p102 = scmp.ne.s32.totalorder %s91, %s94
    %p103 = scmp.eq.s32.totalorder %s16, 1
    %p104 = por %p102, %p103
    %p105 = scmp.ne.s32.totalorder %s94, %s95
    %p106 = scmp.eq.s32.totalorder %s16, 0
    %p107 = por %p105, %p106
    %p108 = scmp.ne.s32.totalorder %s94, %s95
    %p109 = scmp.eq.s32.totalorder %s17, 1
    %p110 = por %p108, %p109
    %p112 = scmp.ne.s32.totalorder %s95, %s111
    %p113 = scmp.eq.s32.totalorder %s17, 0
    %p114 = por %p112, %p113
    %s115 = ssub.s32 %s18, %s30
    %s116 = ssub.s32 %s19, %s26
    %s117 = sor.u32 %s115, %s116
    %p118 = scmp.eq.s32.totalorder %s117, 0
    %s120 = sadd.s32 %s119, 1
    %s121 = scalar_select %p118, %s119, %s120
    %p124 = pneg %p118
    %p125 = scmp.eq.s32.totalorder %s11, 1
    %p126 = por %p124, %p125
    %p127 = scmp.ne.s32.totalorder %s119, %s122
    %p128 = scmp.eq.s32.totalorder %s11, 0
    %p129 = por %p127, %p128
    %p130 = scmp.ne.s32.totalorder %s119, %s122
    %p131 = scmp.eq.s32.totalorder %s16, 1
    %p132 = por %p130, %p131
    %p133 = scmp.ne.s32.totalorder %s122, %s123
    %p134 = scmp.eq.s32.totalorder %s16, 0
    %p135 = por %p133, %p134
    %p136 = scmp.ne.s32.totalorder %s122, %s123
    %p137 = scmp.eq.s32.totalorder %s17, 1
    %p138 = por %p136, %p137
    %p140 = scmp.ne.s32.totalorder %s123, %s139
    %p141 = scmp.eq.s32.totalorder %s17, 0
    %p142 = por %p140, %p141
    %s143 = ssub.s32 %s18, %s30
    %s144 = ssub.s32 %s19, %s26
    %s145 = sor.u32 %s143, %s144
    %p146 = scmp.eq.s32.totalorder %s145, 0
    %s148 = sadd.s32 %s147, 1
    %s149 = scalar_select %p146, %s147, %s148
    %p152 = pneg %p146
    %p153 = scmp.eq.s32.totalorder %s11, 1
    %p154 = por %p152, %p153
    %p155 = scmp.ne.s32.totalorder %s147, %s150
    %p156 = scmp.eq.s32.totalorder %s11, 0
    %p157 = por %p155, %p156
    %p158 = scmp.ne.s32.totalorder %s147, %s150
    %p159 = scmp.eq.s32.totalorder %s16, 1
    %p160 = por %p158, %p159
    %p161 = scmp.ne.s32.totalorder %s150, %s151
    %p162 = scmp.eq.s32.totalorder %s16, 0
    %p163 = por %p161, %p162
    %p164 = scmp.ne.s32.totalorder %s150, %s151
    %p165 = scmp.eq.s32.totalorder %s17, 1
    %p166 = por %p164, %p165
    %p168 = scmp.ne.s32.totalorder %s151, %s167
    %p169 = scmp.eq.s32.totalorder %s17, 0
    %p170 = por %p168, %p169
    %p171 = scmp.le.s32.totalorder 1, %s11
    %p172 = scmp.lt.s32.totalorder %s11, 3
    %p173 = pnand %p171, %p172
    %p174 = pneg %p173
    // Predicated region
    $region9: #{robust_l1.1} parent=5 // pred_check
      _
    $region10: #{robust_l1.1} parent=5 // pred_check_branch
      %176 = sbr.rel (%p173) target = $region12
    $region11: #{robust_l1.1} parent=5 // pred_region
      %s177 = ssub.s32 %s11, 1
    $region12: #{robust_l1.1} parent=5 // pred_fallthru
      _
    %p178 = scmp.lt.s32.totalorder %s11, 2
    // Predicated region
    $region13: #{robust_l1.1} parent=5 // pred_check
      %p179 = pneg %p178
    $region14: #{robust_l1.1} parent=5 // pred_check_branch
      %181 = sbr.rel (%p179) target = $region16
    $region15: #{robust_l1.1} parent=5 // pred_region
      // Predicated region
      $region17: #{robust_l1.1} parent=15 // pred_check
        %p182 = pneg %p45
      $region18: #{robust_l1.1} parent=15 // pred_check_branch
        %184 = sbr.rel (%p182) target = $region20
      $region19: #{robust_l1.1} parent=15 // pred_region
        %p185 = scmp.lt.s32.totalorder %s18, 1
        %s186 = scalar_select %p185, %s18, 1
        %p187 = scmp.lt.s32.totalorder %s19, 0
        %s188 = scalar_select %p187, %s19, 0
        %s189 = smul.addr %s186, 2
        %s190 = sadd.s32 %s188, %s189
        %s191 = smul.addr %s190, 2
        %s192 = scalar_lea.vmem %s0, %s191
      $region20: #{robust_l1.1} parent=15 // pred_fallthru
        _
      // Predicated region
      $region21: #{robust_l1.1} parent=15 // pred_check
        %p193 = pneg %p73
      $region22: #{robust_l1.1} parent=15 // pred_check_branch
        %195 = sbr.rel (%p193) target = $region24
      $region23: #{robust_l1.1} parent=15 // pred_region
        %p196 = scmp.lt.s32.totalorder %s18, 1
        %s197 = scalar_select %p196, %s18, 1
        %p198 = scmp.lt.s32.totalorder %s19, 0
        %s199 = scalar_select %p198, %s19, 0
        %s200 = smul.addr %s197, 2
        %s201 = sadd.s32 %s199, %s200
        %s202 = smul.addr %s201, 2
        %s203 = scalar_lea.vmem %s1, %s202
      $region24: #{robust_l1.1} parent=15 // pred_fallthru
        _
      // Predicated region
      $region25: #{robust_l1.1} parent=15 // pred_check
        %p204 = pneg %p101
      $region26: #{robust_l1.1} parent=15 // pred_check_branch
        %206 = sbr.rel (%p204) target = $region28
      $region27: #{robust_l1.1} parent=15 // pred_region
        %p207 = scmp.lt.s32.totalorder %s18, 1
        %s208 = scalar_select %p207, %s18, 1
        %p209 = scmp.lt.s32.totalorder %s19, 0
        %s210 = scalar_select %p209, %s19, 0
        %s211 = smul.addr %s208, 2
        %s212 = sadd.s32 %s210, %s211
        %s213 = smul.addr %s212, 2
        %s214 = scalar_lea.vmem %s2, %s213
      $region28: #{robust_l1.1} parent=15 // pred_fallthru
        _
    $region16: #{robust_l1.1} parent=5 // pred_fallthru
      _
    %p215 = scmp.le.s32.totalorder 1, %s11
    %p216 = scmp.lt.s32.totalorder %s11, 3
    %p217 = pnand %p215, %p216
    %p218 = pneg %p217
    // Predicated region
    $region29: #{robust_l1.1} parent=5 // pred_check
      _
    $region30: #{robust_l1.1} parent=5 // pred_check_branch
      %220 = sbr.rel (%p217) target = $region32
    $region31: #{robust_l1.1} parent=5 // pred_region
      %s221 = ssub.s32 %s11, 1
      %p222 = scmp.lt.s32.totalorder %s20, 1
      %s223 = scalar_select %p222, %s20, 1
      %p224 = scmp.lt.s32.totalorder %s21, 0
      %s225 = scalar_select %p224, %s21, 0
      %s226 = smul.addr %s223, 2
      %s227 = sadd.s32 %s225, %s226
      %s228 = smul.addr %s227, 2
      %s229 = scalar_lea.vmem %s0, %s228
      %p230 = pneg %p51
      %p231 = pneg %p48
      %p232 = scmp.lt.s32.totalorder %s20, 1
      %s233 = scalar_select %p232, %s20, 1
      %p234 = scmp.lt.s32.totalorder %s21, 0
      %s235 = scalar_select %p234, %s21, 0
      %s236 = smul.addr %s233, 2
      %s237 = sadd.s32 %s235, %s236
      %s238 = smul.addr %s237, 2
      %s239 = scalar_lea.vmem %s1, %s238
      %p240 = pneg %p79
      %p241 = pneg %p76
      %p242 = scmp.lt.s32.totalorder %s20, 1
      %s243 = scalar_select %p242, %s20, 1
      %p244 = scmp.lt.s32.totalorder %s21, 0
      %s245 = scalar_select %p244, %s21, 0
      %s246 = smul.addr %s243, 2
      %s247 = sadd.s32 %s245, %s246
      %s248 = smul.addr %s247, 2
      %s249 = scalar_lea.vmem %s2, %s248
      %p250 = pneg %p107
      %p251 = pneg %p104
      %p252 = pneg %p135
      %p253 = pneg %p132
      %p254 = scmp.lt.s32.totalorder %s20, 1
      %s255 = scalar_select %p254, %s20, 1
      %p256 = scmp.lt.s32.totalorder %s21, 0
      %s257 = scalar_select %p256, %s21, 0
      %s258 = sadd.s32 %s257, %s255
      %s259 = smul.addr %s258, 2
      %s260 = scalar_lea.vmem %s3, %s259
      %p261 = pneg %p163
      %p262 = pneg %p160
      %p263 = scmp.lt.s32.totalorder %s20, 1
      %s264 = scalar_select %p263, %s20, 1
      %p265 = scmp.lt.s32.totalorder %s21, 0
      %s266 = scalar_select %p265, %s21, 0
      %s267 = sadd.s32 %s266, %s264
      %s268 = smul.addr %s267, 2
      %s269 = scalar_lea.vmem %s4, %s268
      %p270 = scmp.lt.s32.totalorder %s20, 1
      %s271 = scalar_select %p270, %s20, 1
      %p272 = scmp.lt.s32.totalorder %s21, 0
      %s273 = scalar_select %p272, %s21, 0
      %s274 = smul.addr %s271, 2
      %s275 = sadd.s32 %s273, %s274
      %s276 = smul.addr %s275, 2
      %s277 = scalar_lea.vmem %s0, %s276
      %p278 = scmp.lt.s32.totalorder %s20, 1
      %s279 = scalar_select %p278, %s20, 1
      %p280 = scmp.lt.s32.totalorder %s21, 0
      %s281 = scalar_select %p280, %s21, 0
      %s282 = smul.addr %s279, 2
      %s283 = sadd.s32 %s281, %s282
      %s284 = smul.addr %s283, 2
      %s285 = scalar_lea.vmem %s1, %s284
      %p286 = scmp.lt.s32.totalorder %s20, 1
      %s287 = scalar_select %p286, %s20, 1
      %p288 = scmp.lt.s32.totalorder %s21, 0
      %s289 = scalar_select %p288, %s21, 0
      %s290 = smul.addr %s287, 2
      %s291 = sadd.s32 %s289, %s290
      %s292 = smul.addr %s291, 2
      %s293 = scalar_lea.vmem %s2, %s292
      %p294 = scmp.lt.s32.totalorder %s20, 1
      %s295 = scalar_select %p294, %s20, 1
      %p296 = scmp.lt.s32.totalorder %s21, 0
      %s297 = scalar_select %p296, %s21, 0
      %s298 = sadd.s32 %s297, %s295
      %s299 = smul.addr %s298, 2
      %s300 = scalar_lea.vmem %s3, %s299
      %p301 = scmp.lt.s32.totalorder %s20, 1
      %s302 = scalar_select %p301, %s20, 1
      %p303 = scmp.lt.s32.totalorder %s21, 0
      %s304 = scalar_select %p303, %s21, 0
      %s305 = sadd.s32 %s304, %s302
      %s306 = smul.addr %s305, 2
      %s307 = scalar_lea.vmem %s4, %s306
      %v308 = vld [vmem:[%s277] sm:$0x3]
      %v309 = vld [vmem:[%s277 + $0x2] sm:$0x3]
      %v310 = vld [vmem:[%s285] sm:$0x3]
      %v311 = vld [vmem:[%s285 + $0x2] sm:$0x3]
      %v312 = vld [vmem:[%s293] sm:$0x3]
      %v313 = vsub.f32 %v310, %v308
      %v314 = vsub.f32 %v311, %v309
      %v315 = vand.u32 2147483647, %v313
      %v316 = vand.u32 2147483647, %v314
      %vm317 = vcmask 1041408
      %v318 = vsel %vm317, %v315, 0.0
      %v319 = vsel %vm317, %v316, 0.0
      %v320 = vadd.f32 %v318, %v319
      %v321 = vadd.f32 %v320, 0.01
      %v322 = vpow.f32 %v321, 0.4
      %v323 = vmul.f32 %v322, %v312
      %324 = vst [vmem:[%s300] sm:$0x3] %v323
      %325 = vst [vmem:[%s307] sm:$0x3] %v312
      %p326 = scmp.lt.s32.totalorder %s20, 1
      %s327 = scalar_select %p326, %s20, 1
      %p328 = scmp.lt.s32.totalorder %s21, 0
      %s329 = scalar_select %p328, %s21, 0
      %s330 = sadd.s32 %s329, %s327
      %s331 = smul.addr %s330, 2
      %s332 = scalar_lea.vmem %s3, %s331
      %p333 = scmp.lt.s32.totalorder %s20, 1
      %s334 = scalar_select %p333, %s20, 1
      %p335 = scmp.lt.s32.totalorder %s21, 0
      %s336 = scalar_select %p335, %s21, 0
      %s337 = sadd.s32 %s336, %s334
      %s338 = smul.addr %s337, 2
      %s339 = scalar_lea.vmem %s4, %s338
      // Predicated region
      $region33: #{robust_l1.1} parent=31 // pred_check
        %p340 = pneg %p132
      $region34: #{robust_l1.1} parent=31 // pred_check_branch
        %342 = sbr.rel (%p340) target = $region36
      $region35: #{robust_l1.1} parent=31 // pred_region
        _
      $region36: #{robust_l1.1} parent=31 // pred_fallthru
        _
      // Predicated region
      $region37: #{robust_l1.1} parent=31 // pred_check
        %p343 = pneg %p160
      $region38: #{robust_l1.1} parent=31 // pred_check_branch
        %345 = sbr.rel (%p343) target = $region40
      $region39: #{robust_l1.1} parent=31 // pred_region
        _
      $region40: #{robust_l1.1} parent=31 // pred_fallthru
        _
    $region32: #{robust_l1.1} parent=5 // pred_fallthru
      _
    %p346 = scmp.le.s32.totalorder 2, %s11
    // Predicated region
    $region41: #{robust_l1.1} parent=5 // pred_check
      %p347 = pneg %p346
    $region42: #{robust_l1.1} parent=5 // pred_check_branch
      %349 = sbr.rel (%p347) target = $region44
    $region43: #{robust_l1.1} parent=5 // pred_region
      %s350 = ssub.s32 %s11, 2
      // Predicated region
      $region45: #{robust_l1.1} parent=43 // pred_check
        %p351 = pneg %p138
      $region46: #{robust_l1.1} parent=43 // pred_check_branch
        %353 = sbr.rel (%p351) target = $region48
      $region47: #{robust_l1.1} parent=43 // pred_region
        %p354 = scmp.lt.s32.totalorder %s22, 1
        %s355 = scalar_select %p354, %s22, 1
        %p356 = scmp.lt.s32.totalorder %s23, 0
        %s357 = scalar_select %p356, %s23, 0
        %s358 = sadd.s32 %s357, %s355
        %s359 = smul.addr %s358, 2
        %s360 = scalar_lea.vmem %s3, %s359
      $region48: #{robust_l1.1} parent=43 // pred_fallthru
        _
      // Predicated region
      $region49: #{robust_l1.1} parent=43 // pred_check
        %p361 = pneg %p166
      $region50: #{robust_l1.1} parent=43 // pred_check_branch
        %363 = sbr.rel (%p361) target = $region52
      $region51: #{robust_l1.1} parent=43 // pred_region
        %p364 = scmp.lt.s32.totalorder %s22, 1
        %s365 = scalar_select %p364, %s22, 1
        %p366 = scmp.lt.s32.totalorder %s23, 0
        %s367 = scalar_select %p366, %s23, 0
        %s368 = sadd.s32 %s367, %s365
        %s369 = smul.addr %s368, 2
        %s370 = scalar_lea.vmem %s4, %s369
      $region52: #{robust_l1.1} parent=43 // pred_fallthru
        _
    $region44: #{robust_l1.1} parent=5 // pred_fallthru
      _
  $region6: #{robust_l1.1} parent=0 // loop_footer
    %s15 = sadd.s32 1, %s11
  $region7: #{robust_l1.1} parent=0 // loop_footer_branch
    %10 = sbr.rel target = $region3
  $region8: #{robust_l1.1} parent=0 // loop_exit
    _

</llo_original>
